<compile_context>
chip_gen: v6e
topology: v6e:2x2x1
jax: 0.10.0
libtpu: 0.0.40
codegen_flags: <defaults>
</compile_context>

<pallas_src>
import jax
import jax.numpy as jnp
from jax.experimental import pallas as pl
from jax.experimental.pallas import tpu as pltpu


def _round_up(n, m):
    return (n + m - 1) // m * m


def mlp_kernel(x_ref, w1_ref, b1_ref, w2_ref, b2_ref, o_ref):
    # In-kernel bf16 cast of the streamed x tile (HBM read stays f32; the cast
    # rides on VPU slack). Layer 1 on the MXU with f32 accumulation.
    x = x_ref[...].astype(w1_ref.dtype)
    h = jnp.dot(x, w1_ref[...], preferred_element_type=jnp.float32)
    h = jnp.maximum(h + b1_ref[...], 0.0)
    # Layer 2 also in bf16 on the MXU (single-pass even on v5e); hidden
    # activation never touches HBM. Bias add in f32, store only n_class cols.
    out = jnp.dot(h.astype(w2_ref.dtype), w2_ref[...],
                  preferred_element_type=jnp.float32)
    o_ref[...] = (out + b2_ref[...]).astype(o_ref.dtype)


def mlp_forward(x, w1, b1, w2, b2, *, block_b=8192, compute_dtype=jnp.bfloat16):
    """x: [B, D_in]; w1: [D_in, H]; b1: [H]; w2: [H, n_class]; b2: [n_class]."""
    B, d_in = x.shape
    hidden = w1.shape[1]
    n_class = w2.shape[1]

    # Batch tile: multiple of 8 (f32 sublanes; also a multiple of 16 for the
    # bf16-packed intermediates at the default 8192), capped at block_b.
    # At block_b=8192 large batches naturally give many grid steps, which is
    # what the v7x megacore sharding needs; on v5e/v6e extra steps only add
    # overhead, so we never shrink the tile below what the batch requires.
    tb = min(block_b, _round_up(B, 8))
    grid = (pl.cdiv(B, tb),)

    # Tiny weights: cast to bf16 (ideally hoisted — init_params already hands
    # back f32, astype here is cheap and a no-op if pre-cast), biases to f32
    # row vectors. All stay resident in VMEM across the whole grid.
    w1_c = w1.astype(compute_dtype)
    w2_c = w2.astype(compute_dtype)
    b1_r = b1.astype(jnp.float32).reshape(1, hidden)
    b2_r = b2.astype(jnp.float32).reshape(1, n_class)

    flops = 2 * B * (d_in * hidden + hidden * n_class)
    bytes_accessed = (
        x.size * x.dtype.itemsize            # streamed x read
        + B * n_class * 4                    # unpadded f32 logits write
        + w1_c.size * 2 + w2_c.size * 2      # resident bf16 weights
        + b1_r.size * 4 + b2_r.size * 4      # resident f32 biases
    )
    cost = pl.CostEstimate(flops=flops, transcendentals=0,
                           bytes_accessed=bytes_accessed)

    out = pl.pallas_call(
        mlp_kernel,
        out_shape=jax.ShapeDtypeStruct((B, n_class), jnp.float32),
        grid_spec=pltpu.PrefetchScalarGridSpec(
            num_scalar_prefetch=0,
            grid=grid,
            in_specs=[
                pl.BlockSpec((tb, d_in), lambda i: (i, 0)),       # stream x tiles
                pl.BlockSpec((d_in, hidden), lambda i: (0, 0)),   # weights resident
                pl.BlockSpec((1, hidden), lambda i: (0, 0)),
                pl.BlockSpec((hidden, n_class), lambda i: (0, 0)),
                pl.BlockSpec((1, n_class), lambda i: (0, 0)),
            ],
            out_specs=pl.BlockSpec((tb, n_class), lambda i: (i, 0)),
        ),
        compiler_params=pltpu.CompilerParams(
            dimension_semantics=("parallel",),  # shards batch loop across TCs on v7x
        ),
        cost_estimate=cost,
    )(x, w1_c, b1_r, w2_c, b2_r)
    return out


def init_params(key, input_dim, n_class, hidden=16):
    # Deterministic init mirroring nn.Linear shapes (weights stored transposed
    # relative to PyTorch's [out, in] convention).
    k1, k2, k3, k4 = jax.random.split(key, 4)
    lim1 = 1.0 / jnp.sqrt(input_dim)
    lim2 = 1.0 / jnp.sqrt(hidden)
    w1 = jax.random.uniform(k1, (input_dim, hidden), jnp.float32, -lim1, lim1)
    b1 = jax.random.uniform(k2, (hidden,), jnp.float32, -lim1, lim1)
    w2 = jax.random.uniform(k3, (hidden, n_class), jnp.float32, -lim2, lim2)
    b2 = jax.random.uniform(k4, (n_class,), jnp.float32, -lim2, lim2)
    return w1, b1, w2, b2


if __name__ == "__main__":
    key = jax.random.PRNGKey(0)
    kx, kp = jax.random.split(key)

    batch, input_dim, n_class = 8, 32, 4
    x = jax.random.normal(kx, (batch, input_dim), jnp.float32)
    w1, b1, w2, b2 = init_params(kp, input_dim, n_class)

    out = mlp_forward(x, w1, b1, w2, b2)
    jax.block_until_ready(out)

    # Reference in plain JAX (f32). The kernel runs the matmuls in bf16 with
    # f32 accumulation, so compare with a bf16-appropriate tolerance.
    ref = jnp.maximum(x @ w1 + b1, 0.0) @ w2 + b2
    assert out.shape == (batch, n_class)
    assert jnp.allclose(out, ref, atol=2e-2, rtol=2e-2), (
        jnp.max(jnp.abs(out - ref)))

    print("KERNEL_OK")
</pallas_src>

<mosaic_0001>
module attributes {stable_mosaic.version = 11 : i64} {
  func.func @mlp_kernel(%arg0: i32, %arg1: memref<8x32xf32, #tpu.memory_space<vmem>>, %arg2: memref<32x16xbf16, #tpu.memory_space<vmem>>, %arg3: memref<1x16xf32, #tpu.memory_space<vmem>>, %arg4: memref<16x4xbf16, #tpu.memory_space<vmem>>, %arg5: memref<1x4xf32, #tpu.memory_space<vmem>>, %arg6: memref<8x4xf32, #tpu.memory_space<vmem>>) attributes {dimension_semantics = [#tpu.dimension_semantics<parallel>], iteration_bounds = array<i64: 1>, scalar_prefetch = 0 : i64, scratch_operands = 0 : i64, tpu.core_type = #tpu.core_type<tc>, window_params = [{transform_indices = @transform_0, window_bounds = array<i64: 8, 32>}, {pipeline_mode = #tpu.pipeline_mode<synchronous>, transform_indices = @transform_1, window_bounds = array<i64: 32, 16>}, {pipeline_mode = #tpu.pipeline_mode<synchronous>, transform_indices = @transform_2, window_bounds = array<i64: 1, 16>}, {pipeline_mode = #tpu.pipeline_mode<synchronous>, transform_indices = @transform_3, window_bounds = array<i64: 16, 4>}, {pipeline_mode = #tpu.pipeline_mode<synchronous>, transform_indices = @transform_4, window_bounds = array<i64: 1, 4>}, {transform_indices = @transform_5, window_bounds = array<i64: 8, 4>}]} {
    %c0 = arith.constant 0 : index
    %c0_0 = arith.constant 0 : index
    %0 = vector.load %arg1[%c0, %c0_0] : memref<8x32xf32, #tpu.memory_space<vmem>>, vector<8x32xf32>
    %1 = arith.truncf %0 : vector<8x32xf32> to vector<8x32xbf16>
    %c0_1 = arith.constant 0 : index
    %c0_2 = arith.constant 0 : index
    %2 = vector.load %arg2[%c0_1, %c0_2] : memref<32x16xbf16, #tpu.memory_space<vmem>>, vector<32x16xbf16>
    %cst = arith.constant dense<0.000000e+00> : vector<8x16xf32>
    %3 = tpu.matmul %1, %2, %cst {dimension_numbers = #tpu.dot_dimension_numbers<[1], [0], [0], [1], [0, 0, 1, 1], [], []>} : vector<8x32xbf16>, vector<32x16xbf16>, vector<8x16xf32> -> vector<8x16xf32>
    %c0_3 = arith.constant 0 : index
    %c0_4 = arith.constant 0 : index
    %4 = vector.load %arg3[%c0_3, %c0_4] : memref<1x16xf32, #tpu.memory_space<vmem>>, vector<1x16xf32>
    %5 = vector.broadcast %4 : vector<1x16xf32> to vector<8x16xf32>
    %6 = arith.addf %3, %5 : vector<8x16xf32>
    %cst_5 = arith.constant 0.000000e+00 : f32
    %7 = vector.broadcast %cst_5 : f32 to vector<8x16xf32>
    %8 = arith.maximumf %6, %7 : vector<8x16xf32>
    %9 = arith.truncf %8 : vector<8x16xf32> to vector<8x16xbf16>
    %c0_6 = arith.constant 0 : index
    %c0_7 = arith.constant 0 : index
    %10 = vector.load %arg4[%c0_6, %c0_7] : memref<16x4xbf16, #tpu.memory_space<vmem>>, vector<16x4xbf16>
    %cst_8 = arith.constant dense<0.000000e+00> : vector<8x4xf32>
    %11 = tpu.matmul %9, %10, %cst_8 {dimension_numbers = #tpu.dot_dimension_numbers<[1], [0], [0], [1], [0, 0, 1, 1], [], []>} : vector<8x16xbf16>, vector<16x4xbf16>, vector<8x4xf32> -> vector<8x4xf32>
    %c0_9 = arith.constant 0 : index
    %c0_10 = arith.constant 0 : index
    %12 = vector.load %arg5[%c0_9, %c0_10] : memref<1x4xf32, #tpu.memory_space<vmem>>, vector<1x4xf32>
    %13 = vector.broadcast %12 : vector<1x4xf32> to vector<8x4xf32>
    %14 = arith.addf %11, %13 : vector<8x4xf32>
    %c0_11 = arith.constant 0 : index
    %c0_12 = arith.constant 0 : index
    %15 = vector.load %arg6[%c0_11, %c0_12] : memref<8x4xf32, #tpu.memory_space<vmem>>, vector<8x4xf32>
    tpu.vector_store %arg6[%c0_11, %c0_12], %14 {strides = array<i32>} : memref<8x4xf32, #tpu.memory_space<vmem>>, vector<8x4xf32>,
    return
  }
  func.func @transform_0(%arg0: i32) -> (i32, i32) {
    %c0_i32 = arith.constant 0 : i32
    %c0_i32_0 = arith.constant 0 : i32
    return %arg0, %c0_i32 : i32, i32
  }
  func.func @transform_1(%arg0: i32) -> (i32, i32) {
    %c0_i32 = arith.constant 0 : i32
    %c0_i32_0 = arith.constant 0 : i32
    %c0_i32_1 = arith.constant 0 : i32
    return %c0_i32, %c0_i32_0 : i32, i32
  }
  func.func @transform_2(%arg0: i32) -> (i32, i32) {
    %c0_i32 = arith.constant 0 : i32
    %c0_i32_0 = arith.constant 0 : i32
    %c0_i32_1 = arith.constant 0 : i32
    return %c0_i32, %c0_i32_0 : i32, i32
  }
  func.func @transform_3(%arg0: i32) -> (i32, i32) {
    %c0_i32 = arith.constant 0 : i32
    %c0_i32_0 = arith.constant 0 : i32
    %c0_i32_1 = arith.constant 0 : i32
    return %c0_i32, %c0_i32_0 : i32, i32
  }
  func.func @transform_4(%arg0: i32) -> (i32, i32) {
    %c0_i32 = arith.constant 0 : i32
    %c0_i32_0 = arith.constant 0 : i32
    %c0_i32_1 = arith.constant 0 : i32
    return %c0_i32, %c0_i32_0 : i32, i32
  }
  func.func @transform_5(%arg0: i32) -> (i32, i32) {
    %c0_i32 = arith.constant 0 : i32
    %c0_i32_0 = arith.constant 0 : i32
    return %arg0, %c0_i32 : i32, i32
  }
}

</mosaic_0001>

<llo_original>
// kernel: tpu_custom_call.1
$region0: #{tpu_custom_call.1}
  #allocation0 [shape = 'u32[]', space=smem, size = 0x4, offset = 0x4, fixed_abs, tag = 'smem constant byte address 0x4 - core index']
  #allocation1 [shape = 'u32[144,128]{1,0:T(1,128)}', space=vmem, size = 0x12000, scoped, tag = 'internal scratch']
  %s0 = inlined_call_operand.vmem [shape: f32[8,32], index: 0, kind: input, shape index: {}]
  %s1 = inlined_call_operand.vmem [shape: bf16[32,16], index: 1, kind: input, shape index: {}]
  %s2 = inlined_call_operand.vmem [shape: f32[1,16], index: 2, kind: input, shape index: {}]
  %s3 = inlined_call_operand.vmem [shape: bf16[16,4], index: 3, kind: input, shape index: {}]
  %s4 = inlined_call_operand.vmem [shape: f32[1,4], index: 4, kind: input, shape index: {}]
  %s5 = inlined_call_operand.vmem [shape: f32[8,4], index: 5, kind: output, shape index: {}]
  %s6 = sld [smem:[#allocation0]]
  $region30: #{tpu_custom_call.1} parent=0
    _
  %s8 = ssub.s32 1, %s6
  %s9 = scalar_select 0, %s8, %s6
  // Predicated region
  $region2: #{tpu_custom_call.1} parent=0 // pred_check
    _
  $region3: #{tpu_custom_call.1} parent=0 // pred_check_branch
    %11 = sbr.rel (0) target = $region5
  $region4: #{tpu_custom_call.1} parent=0 // pred_region
    _
  $region5: #{tpu_custom_call.1} parent=0 // pred_fallthru
    _
  // Predicated region
  $region6: #{tpu_custom_call.1} parent=0 // pred_check
    _
  $region7: #{tpu_custom_call.1} parent=0 // pred_check_branch
    %13 = sbr.rel (0) target = $region9
  $region8: #{tpu_custom_call.1} parent=0 // pred_region
    _
  $region9: #{tpu_custom_call.1} parent=0 // pred_fallthru
    _
  // Predicated region
  $region10: #{tpu_custom_call.1} parent=0 // pred_check
    _
  $region11: #{tpu_custom_call.1} parent=0 // pred_check_branch
    %15 = sbr.rel (0) target = $region13
  $region12: #{tpu_custom_call.1} parent=0 // pred_region
    _
  $region13: #{tpu_custom_call.1} parent=0 // pred_fallthru
    _
  // Predicated region
  $region14: #{tpu_custom_call.1} parent=0 // pred_check
    _
  $region15: #{tpu_custom_call.1} parent=0 // pred_check_branch
    %17 = sbr.rel (0) target = $region17
  $region16: #{tpu_custom_call.1} parent=0 // pred_region
    _
  $region17: #{tpu_custom_call.1} parent=0 // pred_fallthru
    _
  // Predicated region
  $region18: #{tpu_custom_call.1} parent=0 // pred_check
    _
  $region19: #{tpu_custom_call.1} parent=0 // pred_check_branch
    %19 = sbr.rel (0) target = $region21
  $region20: #{tpu_custom_call.1} parent=0 // pred_region
    _
  $region21: #{tpu_custom_call.1} parent=0 // pred_fallthru
    _
  %v21 = vld [vmem:[%s0] sm:$0xff]
  %v22 = vpack.c.bf16 %v21, %v21
  %v23 = vld [vmem:[%s1] sm:$0xf]
  %v24 = vld [vmem:[%s1 + $0x4] sm:$0xf]
  %v25 = vld [vmem:[%s1 + $0x8] sm:$0xf]
  %v26 = vld [vmem:[%s1 + $0xc] sm:$0xf]
  %v27 = vld [vmem:[%s2] sm:$0x1]
  %v29 = vlaneseq
  %v30 = vshrl.u32 %v29, 7
  %v31 = vsub.s32 0, %v30
  %v32 = vrot.slane %v27, %v31
  %v38 = vunpack.c.l.b16 %v23
  %v39 = vunpack.c.l.b16 %v24
  %v40 = vunpack.c.l.b16 %v25
  %v41 = vunpack.c.l.b16 %v26
  %v42 = vpack.c.b16 %v39, %v38
  %v43 = vpack.c.b16 %v41, %v40
  %vm46 = vcmask 261120
  %v48 = vsel %vm46, %v22, 0
  %50 = vmatprep.subr.bf16.mxu0 0
  %51 = vmatpush1.bf16.msra.mxu0 0
  %52 = vmatprep.subr.bf16.mxu0 0
  %53 = vmatpush1.bf16.msra.mxu0 0
  %54 = vmatprep.subr.bf16.mxu0 0
  %55 = vmatpush1.bf16.msra.mxu0 0
  %56 = vmatprep.subr.bf16.mxu0 0
  %57 = vmatpush1.bf16.msra.mxu0 0
  %58 = vmatprep.subr.bf16.mxu0 0
  %59 = vmatpush1.bf16.msra.mxu0 0
  %60 = vmatprep.subr.bf16.mxu0 0
  %61 = vmatpush1.bf16.msra.mxu0 0
  %62 = vmatprep.subr.bf16.mxu0 0
  %63 = vmatpush1.bf16.msra.mxu0 %v43
  %64 = vmatprep.subr.bf16.mxu0 0
  %65 = vmatpush1.bf16.msra.mxu0 %v42
  %66 = vmatprep.subr.bf16.mxu0 0
  %67 = vmatpush2.bf16.msra.mxu0 0
  %68 = vmatprep.subr.bf16.mxu0 0
  %69 = vmatpush2.bf16.msra.mxu0 0
  %70 = vmatprep.subr.bf16.mxu0 0
  %71 = vmatpush2.bf16.msra.mxu0 0
  %72 = vmatprep.subr.bf16.mxu0 0
  %73 = vmatpush2.bf16.msra.mxu0 0
  %74 = vmatprep.subr.bf16.mxu0 0
  %75 = vmatpush2.bf16.msra.mxu0 0
  %76 = vmatprep.subr.bf16.mxu0 0
  %77 = vmatpush2.bf16.msra.mxu0 0
  %78 = vmatprep.subr.bf16.mxu0 0
  %79 = vmatpush2.bf16.msra.mxu0 0
  %80 = vmatprep.subr.bf16.mxu0 0
  %81 = vmatpush2.bf16.msra.mxu0 0
  %82 = vmatprep.mubr.bf16.mxu0 0
  %83 = vmatmul.mubr.bf16.gmra.mxu0 %v48
  %v84 = vpop.f32.mrf.mxu0
  %v85 = vadd.f32 %v32, %v84
  %v86 = vpop.f32.mrf.mxu0
  %v87 = vpop.f32.mrf.mxu0
  %v88 = vpop.f32.mrf.mxu0
  %89 = vdwg.mxu0
  %v90 = vmax.f32 %v85, 0.0
  %v91 = vpack.c.bf16 %v90, %v90
  %v92 = vld [vmem:[%s3] sm:$0xf]
  %v93 = vld [vmem:[%s3 + $0x4] sm:$0xf]
  %v94 = vld [vmem:[%s4] sm:$0x1]
  %v96 = vlaneseq
  %v97 = vshrl.u32 %v96, 7
  %v98 = vsub.s32 0, %v97
  %v99 = vrot.slane %v94, %v98
  %v103 = vunpack.c.l.b16 %v92
  %v104 = vunpack.c.l.b16 %v93
  %v105 = vpack.c.b16 %v104, %v103
  %vm107 = vcmask 130048
  %v109 = vsel %vm107, %v91, 0
  %111 = vmatprep.subr.bf16.mxu0 0
  %112 = vmatpush1.bf16.msra.mxu0 0
  %113 = vmatprep.subr.bf16.mxu0 0
  %114 = vmatpush1.bf16.msra.mxu0 0
  %115 = vmatprep.subr.bf16.mxu0 0
  %116 = vmatpush1.bf16.msra.mxu0 0
  %117 = vmatprep.subr.bf16.mxu0 0
  %118 = vmatpush1.bf16.msra.mxu0 0
  %119 = vmatprep.subr.bf16.mxu0 0
  %120 = vmatpush1.bf16.msra.mxu0 0
  %121 = vmatprep.subr.bf16.mxu0 0
  %122 = vmatpush1.bf16.msra.mxu0 0
  %123 = vmatprep.subr.bf16.mxu0 0
  %124 = vmatpush1.bf16.msra.mxu0 0
  %125 = vmatprep.subr.bf16.mxu0 0
  %126 = vmatpush1.bf16.msra.mxu0 %v105
  %127 = vmatprep.subr.bf16.mxu0 0
  %128 = vmatpush2.bf16.msra.mxu0 0
  %129 = vmatprep.subr.bf16.mxu0 0
  %130 = vmatpush2.bf16.msra.mxu0 0
  %131 = vmatprep.subr.bf16.mxu0 0
  %132 = vmatpush2.bf16.msra.mxu0 0
  %133 = vmatprep.subr.bf16.mxu0 0
  %134 = vmatpush2.bf16.msra.mxu0 0
  %135 = vmatprep.subr.bf16.mxu0 0
  %136 = vmatpush2.bf16.msra.mxu0 0
  %137 = vmatprep.subr.bf16.mxu0 0
  %138 = vmatpush2.bf16.msra.mxu0 0
  %139 = vmatprep.subr.bf16.mxu0 0
  %140 = vmatpush2.bf16.msra.mxu0 0
  %141 = vmatprep.subr.bf16.mxu0 0
  %142 = vmatpush2.bf16.msra.mxu0 0
  %143 = vmatprep.mubr.bf16.mxu0 0
  %144 = vmatmul.mubr.bf16.gmra.mxu0 %v109
  %v145 = vpop.f32.mrf.mxu0
  %v146 = vadd.f32 %v99, %v145
  %v147 = vpop.f32.mrf.mxu0
  %v148 = vpop.f32.mrf.mxu0
  %v149 = vpop.f32.mrf.mxu0
  %150 = vdwg.mxu0
  %vm151 = vcmask 31744
  %152 = vst.msk [vmem:[%s5] sm:$0xff] %vm151, %v146
  // Predicated region
  $region22: #{tpu_custom_call.1} parent=0 // pred_check
    _
  $region23: #{tpu_custom_call.1} parent=0 // pred_check_branch
    %154 = sbr.rel (0) target = $region25
  $region24: #{tpu_custom_call.1} parent=0 // pred_region
    _
  $region25: #{tpu_custom_call.1} parent=0 // pred_fallthru
    _
  // Predicated region
  $region26: #{tpu_custom_call.1} parent=0 // pred_check
    _
  $region27: #{tpu_custom_call.1} parent=0 // pred_check_branch
    %156 = sbr.rel (0) target = $region29
  $region28: #{tpu_custom_call.1} parent=0 // pred_region
    _
  $region29: #{tpu_custom_call.1} parent=0 // pred_fallthru
    _

</llo_original>
